<compile_context>
chip_gen: v7x
topology: tpu7x:2x2x1
jax: 0.10.0
libtpu: 0.0.40
codegen_flags: <defaults>
</compile_context>

<pallas_src>
import jax
import jax.numpy as jnp
from jax.experimental import pallas as pl
from jax.experimental.pallas import tpu as pltpu

LN_EPS = 1e-12


def _bert_output_kernel(h_ref, res_ref, w_ref, p_ref, o_ref, acc_ref):
    """One (tm, H) output tile; the intermediate (reduction) dim is grid axis 1.

    h_ref:   (tm, tk)  intermediate activations tile (native / compute dtype)
    res_ref: (tm, H)   residual (input_tensor) tile
    w_ref:   (tk, H)   dense weight slab (torch Linear weight transposed)
    p_ref:   (3, H)    packed f32 params: [bias; ln_gamma; ln_beta]
    o_ref:   (tm, H)   output tile
    acc_ref: (tm, H)   f32 matmul accumulator scratch (persists across the k axis)
    """
    k = pl.program_id(1)

    @pl.when(k == 0)
    def _():
        acc_ref[...] = jnp.zeros_like(acc_ref)

    # MXU matmul in operand dtype, f32 accumulation.
    acc_ref[...] += jnp.dot(h_ref[...], w_ref[...],
                            preferred_element_type=jnp.float32)

    @pl.when(k == pl.num_programs(1) - 1)
    def _():
        # dense bias + dropout (identity in eval) + residual add + LayerNorm epilogue.
        # TODO(synk): training-mode dropout (RNG mask) not implemented; eval no-op only.
        y = acc_ref[...] + p_ref[0:1, :] + res_ref[...].astype(jnp.float32)
        inv_h = jnp.float32(1.0 / y.shape[-1])
        mean = jnp.sum(y, axis=-1, keepdims=True) * inv_h
        d = y - mean
        var = jnp.sum(d * d, axis=-1, keepdims=True) * inv_h   # centered -> no cancellation
        inv_std = jax.lax.rsqrt(var + LN_EPS)
        o_ref[...] = (d * inv_std * p_ref[1:2, :] + p_ref[2:3, :]).astype(o_ref.dtype)


def _round_up(x, m):
    return ((x + m - 1) // m) * m


def bert_output(hidden_states, input_tensor, weight, bias, gamma, beta,
                *, compute_dtype=None, tm=None, tk=None):
    """Fused BertOutput forward: Linear -> dropout(eval no-op) -> +residual -> LayerNorm.

    hidden_states: (B, S, I); input_tensor: (B, S, H)
    weight: (I, H)  (= torch nn.Linear weight transposed, so the kernel computes x @ W^T + b)
    bias / gamma / beta: (H,)
    compute_dtype=jnp.bfloat16 selects the native bf16 MXU path (recommended for perf;
    accumulation stays f32).  tm / tk override the auto-derived tile sizes.
    """
    B, S, I = hidden_states.shape
    H = input_tensor.shape[-1]
    M = B * S
    out_dtype = hidden_states.dtype

    if compute_dtype is not None:
        hidden_states = hidden_states.astype(compute_dtype)
        weight = weight.astype(compute_dtype)

    h2 = hidden_states.reshape(M, I)
    r2 = input_tensor.reshape(M, H)
    # bias / gamma / beta packed into a single (3, H) f32 block-constant operand.
    params = jnp.stack([bias.astype(jnp.float32),
                        gamma.astype(jnp.float32),
                        beta.astype(jnp.float32)], axis=0)

    isz = jnp.dtype(h2.dtype).itemsize
    rsz = jnp.dtype(r2.dtype).itemsize
    osz = jnp.dtype(out_dtype).itemsize
    wsz = jnp.dtype(weight.dtype).itemsize
    sub = 16 if isz == 2 else 8            # sublane alignment for the row-tile dim

    # --- per-generation VMEM budget (64 MiB on v7x, 128 MiB on v5e/v6e) -----------------
    try:
        vmem_cap = int(pltpu.get_tpu_info().vmem_capacity_bytes)
    except Exception:
        vmem_cap = 64 << 20                # conservative (v7x-sized) fallback
    budget = int(vmem_cap * 0.75)

    # --- weight tiling over the intermediate (reduction) dim ----------------------------
    # Fully-resident, single-buffered weight when it fits half the budget; otherwise stream
    # (tk, H) slabs over an inner "arbitrary" grid axis (double-buffered).
    weight_budget = budget // 2
    if tk is None:
        if I * H * wsz <= weight_budget or I % 128 != 0 or I <= 128:
            tk = I
        else:
            tk = 128
            for cand in range(128, I, 128):
                if I % cand == 0 and 2 * cand * H * wsz <= weight_budget:
                    tk = cand
            # TODO(synk): if I is not 128-aligned and the weight overflows VMEM we fall back
            # to the fully-resident weight and let the compiler manage spills.
    assert tk == I or (I % tk == 0 and tk % 128 == 0), "tk must divide I and be 128-aligned"
    n_k = I // tk
    w_mode = pl.Buffered(1) if n_k == 1 else None       # single-buffer only when constant

    # --- row tile (tm) from the remaining budget ----------------------------------------
    w_bufs = 1 if n_k == 1 else 2
    fixed = w_bufs * tk * H * wsz + 3 * H * 4 + (2 << 20)    # weight + params + headroom
    per_row = (2 * tk * isz            # double-buffered activation tile
               + 2 * H * rsz           # double-buffered residual tile
               + 2 * H * osz           # double-buffered output tile
               + H * 4                 # f32 accumulator scratch
               + 2 * H * 4)            # in-kernel f32 temporaries (y / centered y)
    tm_cap = 1024 if tm is None else tm
    tm_fit = max(sub, ((budget - fixed) // per_row) // sub * sub)
    tm = min(tm_cap, tm_fit, _round_up(M, sub))
    tm = max(sub, (tm // sub) * sub)
    # v7x megacore: make sure the "parallel" row axis has at least 2 tiles when possible.
    if pl.cdiv(M, tm) < 2 and M > sub:
        tm = _round_up(pl.cdiv(M, 2), sub)
    n_tiles = pl.cdiv(M, tm)

    need = fixed + tm * per_row
    vmem_limit = int(min(max(need + (2 << 20), 32 << 20), int(vmem_cap * 0.85)))

    cost = pl.CostEstimate(
        flops=2 * M * I * H,
        transcendentals=M,                 # one rsqrt per row
        bytes_accessed=(M * I * isz + M * H * rsz + I * H * wsz
                        + M * H * osz + 3 * H * 4),
    )

    grid_spec = pltpu.PrefetchScalarGridSpec(
        num_scalar_prefetch=0,
        grid=(n_tiles, n_k),
        in_specs=[
            # streamed (tm, tk) activation tiles
            pl.BlockSpec((tm, tk), lambda i, k: (i, k)),
            # (tm, H) residual tiles (block index constant over k -> fetched once per row tile)
            pl.BlockSpec((tm, H), lambda i, k: (i, 0)),
            # weight: fully resident & single-buffered when n_k == 1, streamed otherwise
            pl.BlockSpec((tk, H), lambda i, k: (k, 0), pipeline_mode=w_mode),
            # packed bias/gamma/beta: block-constant, single-buffered
            pl.BlockSpec((3, H), lambda i, k: (0, 0), pipeline_mode=pl.Buffered(1)),
        ],
        out_specs=pl.BlockSpec((tm, H), lambda i, k: (i, 0)),
        scratch_shapes=[pltpu.VMEM((tm, H), jnp.float32)],
    )

    out = pl.pallas_call(
        _bert_output_kernel,
        out_shape=jax.ShapeDtypeStruct((M, H), out_dtype),
        grid_spec=grid_spec,
        compiler_params=pltpu.CompilerParams(
            dimension_semantics=("parallel", "arbitrary"),
            vmem_limit_bytes=vmem_limit,
        ),
        cost_estimate=cost,
    )(h2, r2, weight, params)

    return out.reshape(B, S, H)


def reference(hidden_states, input_tensor, weight, bias, gamma, beta):
    y = jnp.einsum("bsi,ih->bsh", hidden_states.astype(jnp.float32),
                   weight.astype(jnp.float32)) + bias
    y = y + input_tensor.astype(jnp.float32)
    mean = jnp.mean(y, axis=-1, keepdims=True)
    var = jnp.mean((y - mean) ** 2, axis=-1, keepdims=True)
    return ((y - mean) * jax.lax.rsqrt(var + LN_EPS)) * gamma + beta


if __name__ == "__main__":
    # Small BERT-like config: intermediate_size=256, hidden_size=128.
    I, H = 256, 128
    key = jax.random.PRNGKey(0)
    k1, k2, k3, k4 = jax.random.split(key, 4)

    # torch nn.Linear weight is (H, I); we store its transpose (I, H).
    weight = jax.random.normal(k3, (I, H), dtype=jnp.float32) * (1.0 / jnp.sqrt(I))
    bias = jax.random.normal(k4, (H,), dtype=jnp.float32) * 0.02
    gamma = jnp.ones((H,), dtype=jnp.float32) + 0.1 * jax.random.normal(k4, (H,), jnp.float32)
    beta = 0.05 * jax.random.normal(k3, (H,), dtype=jnp.float32)

    # Case 1: rows a multiple of the sublane count (B*S = 16); >= 2 row tiles for megacore.
    B, S = 2, 8
    hs = jax.random.normal(k1, (B, S, I), dtype=jnp.float32)
    res = jax.random.normal(k2, (B, S, H), dtype=jnp.float32)
    out = jax.block_until_ready(bert_output(hs, res, weight, bias, gamma, beta))
    ref = reference(hs, res, weight, bias, gamma, beta)
    assert out.shape == (B, S, H)
    assert jnp.allclose(out, ref, atol=1e-4, rtol=1e-4), "mismatch (case 1, f32)"

    # Case 2: ragged row count (B*S = 10) -> exercises the in-kernel tail handling
    # (no host-side padding pass).
    B2, S2 = 2, 5
    hs2 = jax.random.normal(k1, (B2, S2, I), dtype=jnp.float32)
    res2 = jax.random.normal(k2, (B2, S2, H), dtype=jnp.float32)
    out2 = jax.block_until_ready(bert_output(hs2, res2, weight, bias, gamma, beta))
    ref2 = reference(hs2, res2, weight, bias, gamma, beta)
    assert out2.shape == (B2, S2, H)
    assert jnp.allclose(out2, ref2, atol=1e-4, rtol=1e-4), "mismatch (case 2, ragged rows)"

    # Case 3: forced K-tiling (tk=128 < I) -> exercises the streamed-weight accumulator path
    # used when the weight does not fit the per-generation VMEM budget.
    out3 = jax.block_until_ready(
        bert_output(hs, res, weight, bias, gamma, beta, tk=128))
    assert jnp.allclose(out3, ref, atol=1e-4, rtol=1e-4), "mismatch (case 3, K-tiled)"

    # Case 4: bf16 MXU path (f32 accumulation), looser tolerance.
    out4 = jax.block_until_ready(
        bert_output(hs, res, weight, bias, gamma, beta, compute_dtype=jnp.bfloat16))
    assert out4.dtype == hs.dtype
    assert jnp.allclose(out4, ref, atol=1e-1, rtol=1e-1), "mismatch (case 4, bf16 path)"

    print("KERNEL_OK")
</pallas_src>

<mosaic_0001>
module attributes {stable_mosaic.version = 11 : i64} {
  func.func @_bert_output_kernel(%arg0: i32, %arg1: i32, %arg2: memref<8x256xf32, #tpu.memory_space<vmem>>, %arg3: memref<8x128xf32, #tpu.memory_space<vmem>>, %arg4: memref<256x128xf32, #tpu.memory_space<vmem>>, %arg5: memref<3x128xf32, #tpu.memory_space<vmem>>, %arg6: memref<8x128xf32, #tpu.memory_space<vmem>>, %arg7: memref<8x128xf32, #tpu.memory_space<vmem>>) attributes {dimension_semantics = [#tpu.dimension_semantics<parallel>, #tpu.dimension_semantics<arbitrary>], iteration_bounds = array<i64: 2, 1>, scalar_prefetch = 0 : i64, scratch_operands = 1 : i64, tpu.core_type = #tpu.core_type<tc>, window_params = [{transform_indices = @transform_0, window_bounds = array<i64: 8, 256>}, {transform_indices = @transform_1, window_bounds = array<i64: 8, 128>}, {pipeline_mode = #tpu.pipeline_mode<synchronous>, transform_indices = @transform_2, window_bounds = array<i64: 256, 128>}, {pipeline_mode = #tpu.pipeline_mode<synchronous>, transform_indices = @transform_3, window_bounds = array<i64: 3, 128>}, {transform_indices = @transform_4, window_bounds = array<i64: 8, 128>}]} {
    %c0_i32 = arith.constant 0 : i32
    %0 = arith.cmpi eq, %arg1, %c0_i32 : i32
    %1 = arith.extui %0 : i1 to i32
    %c0_i32_0 = arith.constant 0 : i32
    %2 = arith.cmpi ne, %1, %c0_i32_0 : i32
    scf.if %2 {
      %cst_10 = arith.constant 0.000000e+00 : f32
      %12 = vector.broadcast %cst_10 : f32 to vector<8x128xf32>
      %c0_11 = arith.constant 0 : index
      %c0_12 = arith.constant 0 : index
      %13 = vector.load %arg7[%c0_11, %c0_12] : memref<8x128xf32, #tpu.memory_space<vmem>>, vector<8x128xf32>
      tpu.vector_store %arg7[%c0_11, %c0_12], %12 {strides = array<i32>} : memref<8x128xf32, #tpu.memory_space<vmem>>, vector<8x128xf32>,
    } else {
    }
    %c0 = arith.constant 0 : index
    %c0_1 = arith.constant 0 : index
    %3 = vector.load %arg7[%c0, %c0_1] : memref<8x128xf32, #tpu.memory_space<vmem>>, vector<8x128xf32>
    %c0_2 = arith.constant 0 : index
    %c0_3 = arith.constant 0 : index
    %4 = vector.load %arg2[%c0_2, %c0_3] : memref<8x256xf32, #tpu.memory_space<vmem>>, vector<8x256xf32>
    %c0_4 = arith.constant 0 : index
    %c0_5 = arith.constant 0 : index
    %5 = vector.load %arg4[%c0_4, %c0_5] : memref<256x128xf32, #tpu.memory_space<vmem>>, vector<256x128xf32>
    %cst = arith.constant dense<0.000000e+00> : vector<8x128xf32>
    %6 = tpu.matmul %4, %5, %cst {dimension_numbers = #tpu.dot_dimension_numbers<[1], [0], [0], [1], [0, 0, 1, 1], [], []>} : vector<8x256xf32>, vector<256x128xf32>, vector<8x128xf32> -> vector<8x128xf32>
    %7 = arith.addf %3, %6 : vector<8x128xf32>
    %c0_6 = arith.constant 0 : index
    %c0_7 = arith.constant 0 : index
    %8 = vector.load %arg7[%c0_6, %c0_7] : memref<8x128xf32, #tpu.memory_space<vmem>>, vector<8x128xf32>
    tpu.vector_store %arg7[%c0_6, %c0_7], %7 {strides = array<i32>} : memref<8x128xf32, #tpu.memory_space<vmem>>, vector<8x128xf32>,
    %c0_i32_8 = arith.constant 0 : i32
    %9 = arith.cmpi eq, %arg1, %c0_i32_8 : i32
    %10 = arith.extui %9 : i1 to i32
    %c0_i32_9 = arith.constant 0 : i32
    %11 = arith.cmpi ne, %10, %c0_i32_9 : i32
    scf.if %11 {
      %c0_10 = arith.constant 0 : index
      %c0_11 = arith.constant 0 : index
      %12 = vector.load %arg7[%c0_10, %c0_11] : memref<8x128xf32, #tpu.memory_space<vmem>>, vector<8x128xf32>
      %c0_12 = arith.constant 0 : index
      %c0_13 = arith.constant 0 : index
      %13 = vector.load %arg5[%c0_12, %c0_13] : memref<3x128xf32, #tpu.memory_space<vmem>>, vector<1x128xf32>
      %14 = vector.broadcast %13 : vector<1x128xf32> to vector<8x128xf32>
      %15 = arith.addf %12, %14 : vector<8x128xf32>
      %c0_14 = arith.constant 0 : index
      %c0_15 = arith.constant 0 : index
      %16 = vector.load %arg3[%c0_14, %c0_15] : memref<8x128xf32, #tpu.memory_space<vmem>>, vector<8x128xf32>
      %17 = arith.addf %15, %16 : vector<8x128xf32>
      %cst_16 = arith.constant dense<0.000000e+00> : vector<8xf32>
      %18 = vector.multi_reduction <add>, %17, %cst_16 [1] : vector<8x128xf32> to vector<8xf32>
      %19 = vector.shape_cast %18 : vector<8xf32> to vector<8x1xf32>
      %cst_17 = arith.constant 7.812500e-03 : f32
      %20 = vector.broadcast %cst_17 : f32 to vector<8x1xf32>
      %21 = arith.mulf %19, %20 : vector<8x1xf32>
      %22 = vector.broadcast %21 : vector<8x1xf32> to vector<8x128xf32>
      %23 = arith.subf %17, %22 : vector<8x128xf32>
      %24 = arith.mulf %23, %23 : vector<8x128xf32>
      %cst_18 = arith.constant dense<0.000000e+00> : vector<8xf32>
      %25 = vector.multi_reduction <add>, %24, %cst_18 [1] : vector<8x128xf32> to vector<8xf32>
      %26 = vector.shape_cast %25 : vector<8xf32> to vector<8x1xf32>
      %cst_19 = arith.constant 7.812500e-03 : f32
      %27 = vector.broadcast %cst_19 : f32 to vector<8x1xf32>
      %28 = arith.mulf %26, %27 : vector<8x1xf32>
      %cst_20 = arith.constant 9.99999996E-13 : f32
      %29 = vector.broadcast %cst_20 : f32 to vector<8x1xf32>
      %30 = arith.addf %28, %29 : vector<8x1xf32>
      %31 = math.rsqrt %30 : vector<8x1xf32>
      %32 = vector.broadcast %31 : vector<8x1xf32> to vector<8x128xf32>
      %33 = arith.mulf %23, %32 : vector<8x128xf32>
      %c1 = arith.constant 1 : index
      %c0_21 = arith.constant 0 : index
      %34 = vector.load %arg5[%c1, %c0_21] : memref<3x128xf32, #tpu.memory_space<vmem>>, vector<1x128xf32>
      %35 = vector.broadcast %34 : vector<1x128xf32> to vector<8x128xf32>
      %36 = arith.mulf %33, %35 : vector<8x128xf32>
      %c2 = arith.constant 2 : index
      %c0_22 = arith.constant 0 : index
      %37 = vector.load %arg5[%c2, %c0_22] : memref<3x128xf32, #tpu.memory_space<vmem>>, vector<1x128xf32>
      %38 = vector.broadcast %37 : vector<1x128xf32> to vector<8x128xf32>
      %39 = arith.addf %36, %38 : vector<8x128xf32>
      %c0_23 = arith.constant 0 : index
      %c0_24 = arith.constant 0 : index
      %40 = vector.load %arg6[%c0_23, %c0_24] : memref<8x128xf32, #tpu.memory_space<vmem>>, vector<8x128xf32>
      tpu.vector_store %arg6[%c0_23, %c0_24], %39 {strides = array<i32>} : memref<8x128xf32, #tpu.memory_space<vmem>>, vector<8x128xf32>,
    } else {
    }
    return
  }
  func.func @transform_0(%arg0: i32, %arg1: i32) -> (i32, i32) {
    %c0_i32 = arith.constant 0 : i32
    return %arg0, %arg1 : i32, i32
  }
  func.func @transform_1(%arg0: i32, %arg1: i32) -> (i32, i32) {
    %c0_i32 = arith.constant 0 : i32
    %c0_i32_0 = arith.constant 0 : i32
    return %arg0, %c0_i32 : i32, i32
  }
  func.func @transform_2(%arg0: i32, %arg1: i32) -> (i32, i32) {
    %c0_i32 = arith.constant 0 : i32
    %c0_i32_0 = arith.constant 0 : i32
    return %arg1, %c0_i32 : i32, i32
  }
  func.func @transform_3(%arg0: i32, %arg1: i32) -> (i32, i32) {
    %c0_i32 = arith.constant 0 : i32
    %c0_i32_0 = arith.constant 0 : i32
    %c0_i32_1 = arith.constant 0 : i32
    return %c0_i32, %c0_i32_0 : i32, i32
  }
  func.func @transform_4(%arg0: i32, %arg1: i32) -> (i32, i32) {
    %c0_i32 = arith.constant 0 : i32
    %c0_i32_0 = arith.constant 0 : i32
    return %arg0, %c0_i32 : i32, i32
  }
}

</mosaic_0001>

<llo_original>
// kernel: tpu_custom_call.1
$region0: #{tpu_custom_call.1}
  #allocation0 [shape = 'u32[]', space=smem, size = 0x4, offset = 0x4, fixed_abs, tag = 'smem constant byte address 0x4 - core index']
  #allocation1 [shape = 'u32[144,128]{1,0:T(1,128)}', space=vmem, size = 0x12000, scoped, tag = 'internal scratch']
  #allocation2 [shape = 'f32[8,128]{1,0:T(8,128)}', space=vmem, size = 0x1000, scoped, tag = 'scratch operand']
  %s0 = inlined_call_operand.hbm [shape: f32[16,256], index: 0, kind: input, shape index: {}]
  %s1 = inlined_call_operand.hbm [shape: f32[16,128], index: 1, kind: input, shape index: {}]
  %s2 = inlined_call_operand.hbm [shape: f32[256,128], index: 2, kind: input, shape index: {}]
  %s3 = inlined_call_operand.vmem [shape: f32[3,128], index: 3, kind: input, shape index: {}]
  %s4 = inlined_call_operand.hbm [shape: f32[16,128], index: 4, kind: output, shape index: {}]
  %s5 = sld [smem:[#allocation0]]
  $region69: #{tpu_custom_call.1} parent=0
    _
  %s7 = ssub.s32 1, %s5
  %s8 = scalar_select 0, %s7, %s5
  $region1: #{tpu_custom_call.1} parent=0
    #allocation3 [shape = 'u8[16384]{0}', space=vmem, size = 0x4000, scoped, tag = 'input window, operand 0']
    #allocation4 [shape = 's32[2]{0}', space=sflag, size = 0x8, scoped, tag = 'scoped memory for tpu_custom_call.1']
    #allocation5 [shape = 's32[2]{0}', space=sflag, size = 0x8, scoped, tag = 'scoped memory for tpu_custom_call.1']
    #allocation6 [shape = 'u8[8192]{0}', space=vmem, size = 0x2000, scoped, tag = 'input window, operand 1']
    #allocation7 [shape = 's32[2]{0}', space=sflag, size = 0x8, scoped, tag = 'scoped memory for tpu_custom_call.1']
    #allocation8 [shape = 'u8[131072]{0}', space=vmem, size = 0x20000, scoped, tag = 'input window, operand 2, single buffered']
    #allocation9 [shape = 'u8[8192]{0}', space=vmem, size = 0x2000, scoped, tag = 'output window, operand 0']
    %9 = vsyncpa [#allocation4], 0
    %s10 = scalar_lea.sflag [#allocation4], 1
    %11 = vsyncpa %s10, 0
    %12 = vsyncpa [#allocation7], 0
    %s13 = scalar_lea.sflag [#allocation7], 1
    %14 = vsyncpa %s13, 0
    %15 = vsyncpa [#allocation5], 0
    %s16 = scalar_lea.sflag [#allocation5], 1
    %17 = vsyncpa %s16, 0
    loop: start=0, step=1, limit=4
    $region2: #{tpu_custom_call.1} parent=1 // loop_pre_header
      _
    $region3: #{tpu_custom_call.1} parent=1 // loop_header
      %s19 = sphi 0, %s23
      %p20 = scmp.ge.s32.totalorder %s19, 4
      %s26 = sphi 0, %s38
      %s27 = sphi 0, %s34
      %s28 = sphi 0, %s26
      %s29 = sphi 0, %s27
      %s30 = sphi 0, %s28
      %s31 = sphi 0, %s29
      %s43 = sphi 0, %s45
      %s46 = sphi 0, %s43
      %s47 = sphi 0, %s46
      %s63 = sphi 0, %s47
      %s69 = sphi 0, %s71
      %s72 = sphi 0, %s69
      %s73 = sphi 0, %s72
      %s89 = sphi 0, %s73
      %s95 = sphi 0, %s97
      %s98 = sphi 0, %s95
      %s99 = sphi 0, %s98
      %s115 = sphi 0, %s99
      %s119 = sphi 0, %s119
      %s121 = sphi 0, %s119
      %s122 = sphi 0, %s121
      %s136 = sphi 0, %s122
      %s142 = sphi 0, %s144
      %s145 = sphi 0, %s142
      %s146 = sphi 0, %s145
      %s162 = sphi 0, %s146
    $region4: #{tpu_custom_call.1} parent=1 // loop_header_branch
      %22 = sbr.rel (%p20) target = $region8
    $region5: #{tpu_custom_call.1} parent=1 // loop_body
      %s24 = ssub.s32 %s19, 1
      %s25 = ssub.s32 %s19, 2
      %s32 = sadd.s32 1, %s27
      %p33 = scmp.ge.s32.totalorder %s32, 1
      %s34 = scalar_select %p33, 0, %s32
      %s35 = sadd.s32 1, %s26
      %s36 = scalar_select %p33, %s35, %s26
      %p37 = scmp.ge.s32.totalorder %s36, 2
      %s38 = scalar_select %p37, 0, %s36
      %s39 = ssub.s32 %s26, %s38
      %s40 = ssub.s32 %s27, %s34
      %s41 = sor.u32 %s39, %s40
      %p42 = scmp.eq.s32.totalorder %s41, 0
      %s44 = sadd.s32 %s43, 1
      %s45 = scalar_select %p42, %s43, %s44
      %p48 = pneg %p42
      %p49 = scmp.eq.s32.totalorder %s19, 1
      %p50 = por %p48, %p49
      %p51 = scmp.ne.s32.totalorder %s43, %s46
      %p52 = scmp.eq.s32.totalorder %s19, 0
      %p53 = por %p51, %p52
      %p54 = scmp.ne.s32.totalorder %s43, %s46
      %p55 = scmp.eq.s32.totalorder %s24, 1
      %p56 = por %p54, %p55
      %p57 = scmp.ne.s32.totalorder %s46, %s47
      %p58 = scmp.eq.s32.totalorder %s24, 0
      %p59 = por %p57, %p58
      %p60 = scmp.ne.s32.totalorder %s46, %s47
      %p61 = scmp.eq.s32.totalorder %s25, 1
      %p62 = por %p60, %p61
      %p64 = scmp.ne.s32.totalorder %s47, %s63
      %p65 = scmp.eq.s32.totalorder %s25, 0
      %p66 = por %p64, %p65
      %s67 = ssub.s32 %s26, %s38
      %p68 = scmp.eq.s32.totalorder %s67, 0
      %s70 = sadd.s32 %s69, 1
      %s71 = scalar_select %p68, %s69, %s70
      %p74 = pneg %p68
      %p75 = scmp.eq.s32.totalorder %s19, 1
      %p76 = por %p74, %p75
      %p77 = scmp.ne.s32.totalorder %s69, %s72
      %p78 = scmp.eq.s32.totalorder %s19, 0
      %p79 = por %p77, %p78
      %p80 = scmp.ne.s32.totalorder %s69, %s72
      %p81 = scmp.eq.s32.totalorder %s24, 1
      %p82 = por %p80, %p81
      %p83 = scmp.ne.s32.totalorder %s72, %s73
      %p84 = scmp.eq.s32.totalorder %s24, 0
      %p85 = por %p83, %p84
      %p86 = scmp.ne.s32.totalorder %s72, %s73
      %p87 = scmp.eq.s32.totalorder %s25, 1
      %p88 = por %p86, %p87
      %p90 = scmp.ne.s32.totalorder %s73, %s89
      %p91 = scmp.eq.s32.totalorder %s25, 0
      %p92 = por %p90, %p91
      %s93 = ssub.s32 %s27, %s34
      %p94 = scmp.eq.s32.totalorder %s93, 0
      %s96 = sadd.s32 %s95, 1
      %s97 = scalar_select %p94, %s95, %s96
      %p100 = pneg %p94
      %p101 = scmp.eq.s32.totalorder %s19, 1
      %p102 = por %p100, %p101
      %p103 = scmp.ne.s32.totalorder %s95, %s98
      %p104 = scmp.eq.s32.totalorder %s19, 0
      %p105 = por %p103, %p104
      %p106 = scmp.ne.s32.totalorder %s95, %s98
      %p107 = scmp.eq.s32.totalorder %s24, 1
      %p108 = por %p106, %p107
      %p109 = scmp.ne.s32.totalorder %s98, %s99
      %p110 = scmp.eq.s32.totalorder %s24, 0
      %p111 = por %p109, %p110
      %p112 = scmp.ne.s32.totalorder %s98, %s99
      %p113 = scmp.eq.s32.totalorder %s25, 1
      %p114 = por %p112, %p113
      %p116 = scmp.ne.s32.totalorder %s99, %s115
      %p117 = scmp.eq.s32.totalorder %s25, 0
      %p118 = por %p116, %p117
      %s120 = sadd.s32 %s119, 1
      %p123 = scmp.eq.s32.totalorder %s19, 1
      %p124 = scmp.ne.s32.totalorder %s119, %s121
      %p125 = scmp.eq.s32.totalorder %s19, 0
      %p126 = por %p124, %p125
      %p127 = scmp.ne.s32.totalorder %s119, %s121
      %p128 = scmp.eq.s32.totalorder %s24, 1
      %p129 = por %p127, %p128
      %p130 = scmp.ne.s32.totalorder %s121, %s122
      %p131 = scmp.eq.s32.totalorder %s24, 0
      %p132 = por %p130, %p131
      %p133 = scmp.ne.s32.totalorder %s121, %s122
      %p134 = scmp.eq.s32.totalorder %s25, 1
      %p135 = por %p133, %p134
      %p137 = scmp.ne.s32.totalorder %s122, %s136
      %p138 = scmp.eq.s32.totalorder %s25, 0
      %p139 = por %p137, %p138
      %s140 = ssub.s32 %s26, %s38
      %p141 = scmp.eq.s32.totalorder %s140, 0
      %s143 = sadd.s32 %s142, 1
      %s144 = scalar_select %p141, %s142, %s143
      %p147 = pneg %p141
      %p148 = scmp.eq.s32.totalorder %s19, 1
      %p149 = por %p147, %p148
      %p150 = scmp.ne.s32.totalorder %s142, %s145
      %p151 = scmp.eq.s32.totalorder %s19, 0
      %p152 = por %p150, %p151
      %p153 = scmp.ne.s32.totalorder %s142, %s145
      %p154 = scmp.eq.s32.totalorder %s24, 1
      %p155 = por %p153, %p154
      %p156 = scmp.ne.s32.totalorder %s145, %s146
      %p157 = scmp.eq.s32.totalorder %s24, 0
      %p158 = por %p156, %p157
      %p159 = scmp.ne.s32.totalorder %s145, %s146
      %p160 = scmp.eq.s32.totalorder %s25, 1
      %p161 = por %p159, %p160
      %p163 = scmp.ne.s32.totalorder %s146, %s162
      %p164 = scmp.eq.s32.totalorder %s25, 0
      %p165 = por %p163, %p164
      %p166 = scmp.le.s32.totalorder 1, %s19
      %p167 = scmp.lt.s32.totalorder %s19, 3
      %p168 = pnand %p166, %p167
      %p169 = pneg %p168
      // Predicated region
      $region9: #{tpu_custom_call.1} parent=5 // pred_check
        _
      $region10: #{tpu_custom_call.1} parent=5 // pred_check_branch
        %171 = sbr.rel (%p168) target = $region12
      $region11: #{tpu_custom_call.1} parent=5 // pred_region
        %s172 = ssub.s32 %s19, 1
        // Predicated region
        $region13: #{tpu_custom_call.1} parent=11 // pred_check
          %p173 = pneg %p111
        $region14: #{tpu_custom_call.1} parent=11 // pred_check_branch
          %175 = sbr.rel (%p173) target = $region16
        $region15: #{tpu_custom_call.1} parent=11 // pred_region
          %s176 = smul.u32 32, %s29
          %s178 = ssub.s32 4096, 4096
          %179 = vsyncadd [#allocation7], %s178
          %s180 = smul.addr %s176, 128
          %s181 = scalar_lea.hbm %s2, %s180
          %s182 = sshll.u32 [#allocation8], 4
          %s183 = int_to_ptr.vmem [resolvable:$true] %s182
          %188 = dma.hbm_to_vmem [thread:$0]  %s181, 4096, %s183, [#allocation7], 128, 128, 8
        $region16: #{tpu_custom_call.1} parent=11 // pred_fallthru
          _
        // Predicated region
        $region17: #{tpu_custom_call.1} parent=11 // pred_check
          %p189 = pneg %p132
        $region18: #{tpu_custom_call.1} parent=11 // pred_check_branch
          %191 = sbr.rel (%p189) target = $region20
        $region19: #{tpu_custom_call.1} parent=11 // pred_region
          _
        $region20: #{tpu_custom_call.1} parent=11 // pred_fallthru
          _
      $region12: #{tpu_custom_call.1} parent=5 // pred_fallthru
        _
      %p192 = scmp.lt.s32.totalorder %s19, 2
      // Predicated region
      $region21: #{tpu_custom_call.1} parent=5 // pred_check
        %p193 = pneg %p192
      $region22: #{tpu_custom_call.1} parent=5 // pred_check_branch
        %195 = sbr.rel (%p193) target = $region24
      $region23: #{tpu_custom_call.1} parent=5 // pred_region
        // Predicated region
        $region25: #{tpu_custom_call.1} parent=23 // pred_check
          %p196 = pneg %p53
        $region26: #{tpu_custom_call.1} parent=23 // pred_check_branch
          %198 = sbr.rel (%p196) target = $region28
        $region27: #{tpu_custom_call.1} parent=23 // pred_region
          %s199 = sand.u32 %s43, 1
          %s200 = scalar_lea.sflag [#allocation4], %s199
          %s201 = sand.u32 %s43, 1
          %s202 = smul.addr %s201, 16
          %s203 = scalar_lea.vmem [#allocation3], %s202
          %s204 = smul.u32 2, %s27
          %s206 = ssub.s32 256, 256
          %207 = vsyncadd %s200, %s206
          %s208 = smul.addr %s26, 2
          %s209 = sadd.s32 %s204, %s208
          %s210 = smul.addr %s209, 128
          %s211 = scalar_lea.hbm %s0, %s210
          %s213 = sshll.u32 %s203, 4
          %s214 = int_to_ptr.vmem [resolvable:$true] %s213
          %216 = dma.hbm_to_vmem [thread:$0]  %s211, 256, %s214, %s200
        $region28: #{tpu_custom_call.1} parent=23 // pred_fallthru
          _
        // Predicated region
        $region29: #{tpu_custom_call.1} parent=23 // pred_check
          %p217 = pneg %p79
        $region30: #{tpu_custom_call.1} parent=23 // pred_check_branch
          %219 = sbr.rel (%p217) target = $region32
        $region31: #{tpu_custom_call.1} parent=23 // pred_region
          %s220 = sand.u32 %s19, 1
          %s221 = scalar_lea.sflag [#allocation7], %s220
          %s222 = sand.u32 %s69, 1
          %s223 = smul.addr %s222, 8
          %s224 = scalar_lea.vmem [#allocation6], %s223
          %s226 = ssub.s32 128, 128
          %227 = vsyncadd %s221, %s226
          %s228 = smul.addr %s26, 128
          %s229 = scalar_lea.hbm %s1, %s228
          %s231 = sshll.u32 %s224, 4
          %s232 = int_to_ptr.vmem [resolvable:$true] %s231
          %234 = dma.hbm_to_vmem [thread:$0]  %s229, 128, %s232, %s221
        $region32: #{tpu_custom_call.1} parent=23 // pred_fallthru
          _
      $region24: #{tpu_custom_call.1} parent=5 // pred_fallthru
        _
      %p235 = scmp.le.s32.totalorder 1, %s19
      %p236 = scmp.lt.s32.totalorder %s19, 3
      %p237 = pnand %p235, %p236
      %p238 = pneg %p237
      // Predicated region
      $region33: #{tpu_custom_call.1} parent=5 // pred_check
        _
      $region34: #{tpu_custom_call.1} parent=5 // pred_check_branch
        %240 = sbr.rel (%p237) target = $region36
      $region35: #{tpu_custom_call.1} parent=5 // pred_region
        %s241 = ssub.s32 %s19, 1
        %s242 = sand.u32 %s46, 1
        %s243 = scalar_lea.sflag [#allocation4], %s242
        %s244 = sand.u32 %s46, 1
        %s245 = smul.addr %s244, 16
        %s246 = scalar_lea.vmem [#allocation3], %s245
        // Predicated region
        $region37: #{tpu_custom_call.1} parent=35 // pred_check
          %p247 = pneg %p59
        $region38: #{tpu_custom_call.1} parent=35 // pred_check_branch
          %249 = sbr.rel (%p247) target = $region40
        $region39: #{tpu_custom_call.1} parent=35 // pred_region
          %250 = dma.done %s243, 256
        $region40: #{tpu_custom_call.1} parent=35 // pred_fallthru
          _
        %s251 = sand.u32 %s24, 1
        %s252 = scalar_lea.sflag [#allocation7], %s251
        %s253 = sand.u32 %s72, 1
        %s254 = smul.addr %s253, 8
        %s255 = scalar_lea.vmem [#allocation6], %s254
        // Predicated region
        $region41: #{tpu_custom_call.1} parent=35 // pred_check
          %p256 = pneg %p85
        $region42: #{tpu_custom_call.1} parent=35 // pred_check_branch
          %258 = sbr.rel (%p256) target = $region44
        $region43: #{tpu_custom_call.1} parent=35 // pred_region
          %259 = dma.done %s252, 128
        $region44: #{tpu_custom_call.1} parent=35 // pred_fallthru
          _
        // Predicated region
        $region45: #{tpu_custom_call.1} parent=35 // pred_check
          %p260 = pneg %p111
        $region46: #{tpu_custom_call.1} parent=35 // pred_check_branch
          %262 = sbr.rel (%p260) target = $region48
        $region47: #{tpu_custom_call.1} parent=35 // pred_region
          %263 = dma.done [#allocation7], 4096
        $region48: #{tpu_custom_call.1} parent=35 // pred_fallthru
          _
        %s264 = sand.u32 %s46, 1
        %s265 = scalar_lea.sflag [#allocation4], %s264
        %s266 = sand.u32 %s46, 1
        %s267 = smul.addr %s266, 16
        %s268 = scalar_lea.vmem [#allocation3], %s267
        %p269 = pneg %p59
        %p270 = pneg %p56
        %s271 = sand.u32 %s24, 1
        %s272 = scalar_lea.sflag [#allocation7], %s271
        %s273 = sand.u32 %s72, 1
        %s274 = smul.addr %s273, 8
        %s275 = scalar_lea.vmem [#allocation6], %s274
        %p276 = pneg %p85
        %p277 = pneg %p82
        %p278 = pneg %p111
        %p279 = pneg %p108
        %p280 = pneg %p132
        %p281 = pneg %p129
        %p282 = pneg %p158
        %p283 = pneg %p155
        %s284 = sand.u32 %s145, 1
        %s285 = scalar_lea.sflag [#allocation5], %s284
        %s286 = sand.u32 %s145, 1
        %s287 = smul.addr %s286, 8
        %s288 = scalar_lea.vmem [#allocation9], %s287
        %s289 = smul.u32 2, %s29
        %s290 = smul.u32 32, %s29
        %p291 = scmp.eq.s32.totalorder %s29, 0
        // Predicated region
        $region49: #{tpu_custom_call.1} parent=35 // pred_check
          %p292 = pneg %p291
        $region50: #{tpu_custom_call.1} parent=35 // pred_check_branch
          %294 = sbr.rel (%p292) target = $region52
        $region51: #{tpu_custom_call.1} parent=35 // pred_region
          %295 = vst [vmem:[#allocation2] sm:$0xff] 0.0
        $region52: #{tpu_custom_call.1} parent=35 // pred_fallthru
          _
        %v296 = vld [vmem:[#allocation2] sm:$0xff]
        %v297 = vld [vmem:[%s246] sm:$0xff]
        %v298 = vld [vmem:[%s246 + $0x8] sm:$0xff]
        %v299 = vld [vmem:[#allocation8] sm:$0xff]
        %v300 = vld [vmem:[#allocation8 + $0x8] sm:$0xff]
        %v301 = vld [vmem:[#allocation8 + $0x10] sm:$0xff]
        %v302 = vld [vmem:[#allocation8 + $0x18] sm:$0xff]
        %v303 = vld [vmem:[#allocation8 + $0x20] sm:$0xff]
        %v304 = vld [vmem:[#allocation8 + $0x28] sm:$0xff]
        %v305 = vld [vmem:[#allocation8 + $0x30] sm:$0xff]
        %v306 = vld [vmem:[#allocation8 + $0x38] sm:$0xff]
        %v307 = vld [vmem:[#allocation8 + $0x40] sm:$0xff]
        %v308 = vld [vmem:[#allocation8 + $0x48] sm:$0xff]
        %v309 = vld [vmem:[#allocation8 + $0x50] sm:$0xff]
        %v310 = vld [vmem:[#allocation8 + $0x58] sm:$0xff]
        %v311 = vld [vmem:[#allocation8 + $0x60] sm:$0xff]
        %v312 = vld [vmem:[#allocation8 + $0x68] sm:$0xff]
        %v313 = vld [vmem:[#allocation8 + $0x70] sm:$0xff]
        %v314 = vld [vmem:[#allocation8 + $0x78] sm:$0xff]
        %v315 = vld [vmem:[#allocation8 + $0x80] sm:$0xff]
        %v316 = vld [vmem:[#allocation8 + $0x88] sm:$0xff]
        %v317 = vld [vmem:[#allocation8 + $0x90] sm:$0xff]
        %v318 = vld [vmem:[#allocation8 + $0x98] sm:$0xff]
        %v319 = vld [vmem:[#allocation8 + $0xa0] sm:$0xff]
        %v320 = vld [vmem:[#allocation8 + $0xa8] sm:$0xff]
        %v321 = vld [vmem:[#allocation8 + $0xb0] sm:$0xff]
        %v322 = vld [vmem:[#allocation8 + $0xb8] sm:$0xff]
        %v323 = vld [vmem:[#allocation8 + $0xc0] sm:$0xff]
        %v324 = vld [vmem:[#allocation8 + $0xc8] sm:$0xff]
        %v325 = vld [vmem:[#allocation8 + $0xd0] sm:$0xff]
        %v326 = vld [vmem:[#allocation8 + $0xd8] sm:$0xff]
        %v327 = vld [vmem:[#allocation8 + $0xe0] sm:$0xff]
        %v328 = vld [vmem:[#allocation8 + $0xe8] sm:$0xff]
        %v329 = vld [vmem:[#allocation8 + $0xf0] sm:$0xff]
        %v330 = vld [vmem:[#allocation8 + $0xf8] sm:$0xff]
        %331 = vmatprep.subr.mxu0 0.0
        %332 = vmatpush1.msra.mxu0 %v299
        %333 = vmatprep.subr.mxu0 0.0
        %334 = vmatpush1.msra.mxu0 %v300
        %335 = vmatprep.subr.mxu0 0.0
        %336 = vmatpush1.msra.mxu0 %v301
        %337 = vmatprep.subr.mxu0 0.0
        %338 = vmatpush1.msra.mxu0 %v302
        %339 = vmatprep.subr.mxu0 0.0
        %340 = vmatpush1.msra.mxu0 %v303
        %341 = vmatprep.subr.mxu0 0.0
        %342 = vmatpush1.msra.mxu0 %v304
        %343 = vmatprep.subr.mxu0 0.0
        %344 = vmatpush1.msra.mxu0 %v305
        %345 = vmatprep.subr.mxu0 0.0
        %346 = vmatpush1.msra.mxu0 %v306
        %347 = vmatprep.subr.mxu0 0.0
        %348 = vmatpush1.msra.mxu0 %v307
        %349 = vmatprep.subr.mxu0 0.0
        %350 = vmatpush1.msra.mxu0 %v308
        %351 = vmatprep.subr.mxu0 0.0
        %352 = vmatpush1.msra.mxu0 %v309
        %353 = vmatprep.subr.mxu0 0.0
        %354 = vmatpush1.msra.mxu0 %v310
        %355 = vmatprep.subr.mxu0 0.0
        %356 = vmatpush1.msra.mxu0 %v311
        %357 = vmatprep.subr.mxu0 0.0
        %358 = vmatpush1.msra.mxu0 %v312
        %359 = vmatprep.subr.mxu0 0.0
        %360 = vmatpush1.msra.mxu0 %v313
        %361 = vmatprep.subr.mxu0 0.0
        %362 = vmatpush1.msra.mxu0 %v314
        %363 = vmatprep.subr.mxu0 0.0
        %364 = vmatpush1.msra.mxu0 %v315
        %365 = vmatprep.subr.mxu0 0.0
        %366 = vmatpush1.msra.mxu0 %v316
        %367 = vmatprep.subr.mxu0 0.0
        %368 = vmatpush1.msra.mxu0 %v317
        %369 = vmatprep.subr.mxu0 0.0
        %370 = vmatpush1.msra.mxu0 %v318
        %371 = vmatprep.subr.mxu0 0.0
        %372 = vmatpush1.msra.mxu0 %v319
        %373 = vmatprep.subr.mxu0 0.0
        %374 = vmatpush1.msra.mxu0 %v320
        %375 = vmatprep.subr.mxu0 0.0
        %376 = vmatpush1.msra.mxu0 %v321
        %377 = vmatprep.subr.mxu0 0.0
        %378 = vmatpush1.msra.mxu0 %v322
        %379 = vmatprep.subr.mxu0 0.0
        %380 = vmatpush1.msra.mxu0 %v323
        %381 = vmatprep.subr.mxu0 0.0
        %382 = vmatpush1.msra.mxu0 %v324
        %383 = vmatprep.subr.mxu0 0.0
        %384 = vmatpush1.msra.mxu0 %v325
        %385 = vmatprep.subr.mxu0 0.0
        %386 = vmatpush1.msra.mxu0 %v326
        %387 = vmatprep.subr.mxu0 0.0
        %388 = vmatpush1.msra.mxu0 %v327
        %389 = vmatprep.subr.mxu0 0.0
        %390 = vmatpush1.msra.mxu0 %v328
        %391 = vmatprep.subr.mxu0 0.0
        %392 = vmatpush1.msra.mxu0 %v329
        %393 = vmatprep.subr.mxu0 0.0
        %394 = vmatpush1.msra.mxu0 %v330
        %395 = vmatprep.mubr.f32.mxu0 %v298
        %396 = vmatmul.mubr.f32.gmra.mrb[0].mxu0 %v297
        %v397 = vpop.f32.mrb[0].mxu0
        %v398 = vadd.f32 0.0, %v397
        %v399 = vpop.f32.mrb[0].mxu0
        %400 = vdwg.mxu0
        %v401 = vadd.f32 %v296, %v398
        %402 = vst [vmem:[#allocation2] sm:$0xff] %v401
        // Predicated region
        $region53: #{tpu_custom_call.1} parent=35 // pred_check
          %p403 = pneg %p291
        $region54: #{tpu_custom_call.1} parent=35 // pred_check_branch
          %405 = sbr.rel (%p403) target = $region56
        $region55: #{tpu_custom_call.1} parent=35 // pred_region
          %v406 = vld [vmem:[#allocation2] sm:$0xff]
          %v407 = vld [vmem:[%s3] sm:$0x1]
          %v408 = vlaneseq
          %v409 = vshrl.u32 %v408, 7
          %v410 = vsub.s32 0, %v409
          %v411 = vrot.slane %v407, %v410
          %v412 = vadd.f32 %v406, %v411
          %v413 = vld [vmem:[%s255] sm:$0xff]
          %v414 = vadd.f32 %v412, %v413
          %415 = vadd.xlane.f32.xlu0 %v414
          %v416 = vpop.xlane.xlu0 %415
          %v417 = vmul.f32 %v416, 0.0078125
          %v418 = vsub.f32 %v414, %v417
          %v419 = vmul.f32 %v418, %v418
          %420 = vadd.xlane.f32.xlu0 %v419
          %v421 = vpop.xlane.xlu0 %420
          %v422 = vmul.f32 %v421, 0.0078125
          %v423 = vadd.f32 %v422, 1e-12
          %v424 = vrsqrt.pop %v423
          %v425 = vmul.f32 %v418, %v424
          %v426 = vld [vmem:[%s3 + $0x1] sm:$0x1]
          %v427 = vlaneseq
          %v428 = vshrl.u32 %v427, 7
          %v429 = vsub.s32 0, %v428
          %v430 = vrot.slane %v426, %v429
          %v431 = vmul.f32 %v425, %v430
          %v432 = vld [vmem:[%s3 + $0x2] sm:$0x1]
          %v433 = vlaneseq
          %v434 = vshrl.u32 %v433, 7
          %v435 = vsub.s32 0, %v434
          %v436 = vrot.slane %v432, %v435
          %v437 = vadd.f32 %v431, %v436
          %438 = vst [vmem:[%s288] sm:$0xff] %v437
        $region56: #{tpu_custom_call.1} parent=35 // pred_fallthru
          _
        %s439 = sand.u32 %s145, 1
        %s440 = scalar_lea.sflag [#allocation5], %s439
        %s441 = sand.u32 %s145, 1
        %s442 = smul.addr %s441, 8
        %s443 = scalar_lea.vmem [#allocation9], %s442
        // Predicated region
        $region57: #{tpu_custom_call.1} parent=35 // pred_check
          %p444 = pneg %p155
        $region58: #{tpu_custom_call.1} parent=35 // pred_check_branch
          %446 = sbr.rel (%p444) target = $region60
        $region59: #{tpu_custom_call.1} parent=35 // pred_region
          %s448 = ssub.s32 128, 128
          %449 = vsyncadd %s440, %s448
          %s450 = smul.addr %s28, 128
          %s451 = scalar_lea.hbm %s4, %s450
          %s453 = sshll.u32 %s443, 4
          %s454 = int_to_ptr.vmem [resolvable:$true] %s453
          %456 = dma.vmem_to_hbm [thread:$0]  %s454, 128, %s451, %s440
        $region60: #{tpu_custom_call.1} parent=35 // pred_fallthru
          _
      $region36: #{tpu_custom_call.1} parent=5 // pred_fallthru
        _
      %p457 = scmp.le.s32.totalorder 2, %s19
      // Predicated region
      $region61: #{tpu_custom_call.1} parent=5 // pred_check
        %p458 = pneg %p457
      $region62: #{tpu_custom_call.1} parent=5 // pred_check_branch
        %460 = sbr.rel (%p458) target = $region64
      $region63: #{tpu_custom_call.1} parent=5 // pred_region
        %s461 = ssub.s32 %s19, 2
        // Predicated region
        $region65: #{tpu_custom_call.1} parent=63 // pred_check
          %p462 = pneg %p161
        $region66: #{tpu_custom_call.1} parent=63 // pred_check_branch
          %464 = sbr.rel (%p462) target = $region68
        $region67: #{tpu_custom_call.1} parent=63 // pred_region
          %s465 = sand.u32 %s146, 1
          %s466 = scalar_lea.sflag [#allocation5], %s465
          %s467 = sand.u32 %s146, 1
          %s468 = smul.addr %s467, 8
          %s469 = scalar_lea.vmem [#allocation9], %s468
          %470 = dma.done %s466, 128
        $region68: #{tpu_custom_call.1} parent=63 // pred_fallthru
          _
      $region64: #{tpu_custom_call.1} parent=5 // pred_fallthru
        _
    $region6: #{tpu_custom_call.1} parent=1 // loop_footer
      %s23 = sadd.s32 1, %s19
    $region7: #{tpu_custom_call.1} parent=1 // loop_footer_branch
      %18 = sbr.rel target = $region3
    $region8: #{tpu_custom_call.1} parent=1 // loop_exit
      _
    %471 = vsyncpa [#allocation4], 1
    %s472 = scalar_lea.sflag [#allocation4], 1
    %473 = vsyncpa %s472, 1
    %474 = vsyncpa [#allocation7], 1
    %s475 = scalar_lea.sflag [#allocation7], 1
    %476 = vsyncpa %s475, 1
    %477 = vsyncpa [#allocation5], 1
    %s478 = scalar_lea.sflag [#allocation5], 1
    %479 = vsyncpa %s478, 1

</llo_original>
